<compile_context>
chip_gen: v7x
topology: tpu7x:2x2x1
jax: 0.10.0
libtpu: 0.0.40
codegen_flags: <defaults>
</compile_context>

<pallas_src>
import functools
import numpy as np

import jax
import jax.numpy as jnp
from jax.experimental import pallas as pl
from jax.experimental.pallas import tpu as pltpu


def _round_up(x, m):
    return ((x + m - 1) // m) * m


def _pick_batch_tile(rows, target=256):
    """Largest batch tile <= target that keeps the output block sublane-legal."""
    if rows <= target:
        return rows
    tb = (target // 8) * 8
    while tb >= 8:
        if rows % tb == 0:
            return tb
        tb -= 8
    return rows


# ---------------------------------------------------------------------------
# Kernel 1: fused Inception conv + bias + ReLU + max-pool-over-time for the
# stacked [q; a] batch.  Batch-tile grid, "parallel" semantics.
# ---------------------------------------------------------------------------
def _conv_pool_kernel(filter_windows, filter_num, f_pad, nf_pad,
                      x_ref, wcat_ref, bconv_ref, v_ref):
    TB, H, Wd = x_ref.shape
    F = filter_num
    M = TB * H

    # One MXU push covers every window / tap / batch row in this tile.
    y = jnp.dot(x_ref[...].reshape(M, Wd), wcat_ref[...],
                preferred_element_type=jnp.float32)           # (M, ncols) f32
    bconv = bconv_ref[...]                                    # (n_win, f_pad) f32

    # Local sentence position of every row (to mask rows past each window's h_out).
    local_h = jax.lax.broadcasted_iota(jnp.int32, (M, f_pad), 0) % H

    feats = []
    off = 0
    for k, fh in enumerate(filter_windows):                   # static tiny loop
        h_out = H - fh + 1
        acc = y[:, off:off + f_pad]                           # lane-aligned slab
        for dh in range(1, fh):
            c0 = off + dh * f_pad                             # multiple of 128
            slab = y[:, c0:c0 + f_pad]
            # np.roll(slab, -dh, axis=0): row r receives y[r + dh].  Wrapped rows
            # only land on positions the validity mask zeroes out below.
            acc = acc + pltpu.roll(slab, shift=M - dh, axis=0)
        act = jnp.maximum(acc + bconv[k:k + 1, :], 0.0)       # bias + ReLU (f32)
        act = jnp.where(local_h < h_out, act, 0.0)            # ReLU >= 0 -> exact
        pooled = jnp.max(act.reshape(TB, H, f_pad), axis=1)   # MaxPool2d((h_out,1))
        feats.append(pooled[:, :F])
        off += fh * f_pad

    vec = jnp.concatenate(feats, axis=-1)                     # (TB, NF) torch.cat order
    pad = jnp.zeros((TB, nf_pad - vec.shape[-1]), jnp.float32)
    v_ref[...] = jnp.concatenate([vec, pad], axis=-1)         # lane-dense store


# ---------------------------------------------------------------------------
# Kernel 2: InteractLayer + BatchNorm (batch stats) + MLPDropout head.
# Single block over the full batch (batch statistics couple the batch).
# ---------------------------------------------------------------------------
def _head_kernel(B, NF, n_in, n_hidden, n_out, use_dropout,
                 vec_ref, wint2_ref, w1_ref, w2_ref, slab_ref, *rest):
    if use_dropout:
        mask_ref, out_ref = rest
    else:
        (out_ref,) = rest

    v = vec_ref[...]                                          # (2B, NF_PAD) f32
    q = v[:B, :NF]
    a = v[B:2 * B, :NF]

    # InteractLayer: qa[b,m] = q[b] . W[m] . a[b]
    #   t[b, m*NF+i] = sum_j W[m,i,j] a[b,j]        (bf16 MXU matmul, f32 acc)
    #   qa[b, m]     = sum_i q[b,i] * t[b,m,i]      (VPU multiply + XLU reduce)
    t = jnp.dot(a.astype(jnp.bfloat16), wint2_ref[...],
                preferred_element_type=jnp.float32)           # (B, n_in*NF)
    qa = jnp.sum(t.reshape(B, n_in, NF) * q[:, None, :], axis=-1)   # (B, n_in)

    slab = slab_ref[...]                                      # packed small params
    gamma = slab[:, 0:n_in]
    beta = slab[:, n_in:2 * n_in]
    b1 = slab[:, 2 * n_in:2 * n_in + n_hidden]
    b2 = slab[:, 2 * n_in + n_hidden:2 * n_in + n_hidden + n_out]

    # BatchNormLayer (training-mode batch statistics, eps = 1e-5)
    mean = jnp.mean(qa, axis=0, keepdims=True)
    var = jnp.mean((qa - mean) ** 2, axis=0, keepdims=True)
    bn = (qa - mean) * jax.lax.rsqrt(var + 1e-5) * gamma + beta

    # MLPDropout: tanh hidden -> (optional inverted dropout) -> softmax output
    h = jnp.tanh(jnp.dot(bn.astype(jnp.bfloat16), w1_ref[...],
                         preferred_element_type=jnp.float32) + b1)
    if use_dropout:
        h = h * mask_ref[...]
    logits = jnp.dot(h.astype(jnp.bfloat16), w2_ref[...],
                     preferred_element_type=jnp.float32) + b2

    m = jnp.max(logits, axis=-1, keepdims=True)
    e = jnp.exp(logits - m)
    prop = e / jnp.sum(e, axis=-1, keepdims=True)

    idx = jax.lax.broadcasted_iota(jnp.int32, logits.shape, 1)
    cate = jnp.min(jnp.where(logits >= m, idx, jnp.int32(2 ** 30)),
                   axis=-1, keepdims=True).astype(jnp.float32)

    # Lane-dense single store: [prop | argmax-as-f32 | zero pad]
    padw = out_ref.shape[-1]
    pad = jnp.zeros((B, padw - n_out - 1), jnp.float32)
    out_ref[...] = jnp.concatenate([prop, cate, pad], axis=-1)


def qa_cnn_forward(params, q_ids, a_ids, drop_rate, seed, filter_windows, filter_num,
                   n_in, n_hidden, n_out):
    """embedding -> inception CNN -> interact -> batchnorm -> MLP(dropout)."""
    emb = params["embedding"]
    # TODO(synk): move this gather into kernel 1 (scalar-prefetched ids) at scale.
    qe = emb[q_ids].astype(jnp.bfloat16)                      # (B, H, Wd)
    ae = emb[a_ids].astype(jnp.bfloat16)
    x = jnp.concatenate([qe, ae], axis=0)                     # (2B, H, Wd) stacked

    B, H = q_ids.shape
    Wd = emb.shape[1]
    F = filter_num
    n_win = len(filter_windows)
    NF = n_win * F
    f_pad = _round_up(F, 128)                                 # lane-aligned tap slabs
    nf_pad = _round_up(max(NF, 128), 128)
    ncols = sum(filter_windows) * f_pad
    rows = 2 * B

    # Fused conv weight: columns [window k][tap dh][filter, zero-padded to 128 lanes].
    pieces = []
    for k, fh in enumerate(filter_windows):
        for dh in range(fh):
            slab = params["wconv"][k, dh]                     # (Wd, F)
            pieces.append(jnp.pad(slab, ((0, 0), (0, f_pad - F))))
    wcat = jnp.concatenate(pieces, axis=1).astype(jnp.bfloat16)   # (Wd, ncols)
    bconv = jnp.pad(params["bconv"], ((0, 0), (0, f_pad - F)))    # (n_win, f_pad) f32

    TB = _pick_batch_tile(rows)
    grid = (rows // TB,)

    vmem1 = int(2 * (TB * H * Wd * 2 + Wd * ncols * 2 + n_win * f_pad * 4
                     + TB * nf_pad * 4)
                + TB * H * ncols * 4 + 4 * TB * H * f_pad * 4)
    vmem1 = min(max(vmem1 + (4 << 20), 16 << 20), 64 << 20)
    cost1 = pl.CostEstimate(
        flops=int(2 * rows * H * Wd * ncols),
        transcendentals=0,
        bytes_accessed=int(x.size * 2 + grid[0] * (wcat.size * 2 + bconv.size * 4)
                           + rows * nf_pad * 4))

    conv_kernel = functools.partial(_conv_pool_kernel, tuple(filter_windows),
                                    F, f_pad, nf_pad)
    vecs = pl.pallas_call(
        conv_kernel,
        out_shape=jax.ShapeDtypeStruct((rows, nf_pad), jnp.float32),
        grid=grid,
        in_specs=[pl.BlockSpec((TB, H, Wd), lambda i: (i, 0, 0)),
                  pl.BlockSpec((Wd, ncols), lambda i: (0, 0)),
                  pl.BlockSpec((n_win, f_pad), lambda i: (0, 0))],
        out_specs=pl.BlockSpec((TB, nf_pad), lambda i: (i, 0)),
        compiler_params=pltpu.CompilerParams(
            dimension_semantics=("parallel",),
            vmem_limit_bytes=vmem1),
        cost_estimate=cost1,
    )(x, wcat, bconv)

    # ---- tiny head over the full batch: interact + batchnorm + MLP ----
    wint2 = jnp.transpose(params["wint"], (2, 0, 1)).reshape(NF, n_in * NF)
    wint2 = wint2.astype(jnp.bfloat16)
    w1 = params["w1"].astype(jnp.bfloat16)
    w2 = params["w2"].astype(jnp.bfloat16)
    slab = jnp.concatenate([params["gamma"], params["beta"],
                            params["b1"], params["b2"]], axis=1)   # (1, P) f32

    use_dropout = drop_rate > 0.0
    extra = []
    if use_dropout:
        keep = jax.random.bernoulli(jax.random.PRNGKey(seed), 1.0 - drop_rate,
                                    (B, n_hidden))
        extra.append(keep.astype(jnp.float32) / (1.0 - drop_rate))

    PADW = 128
    head_kernel = functools.partial(_head_kernel, B, NF, n_in, n_hidden, n_out,
                                    use_dropout)
    vmem_spec = lambda: pl.BlockSpec(memory_space=pltpu.MemorySpace.VMEM)
    cost2 = pl.CostEstimate(
        flops=int(2 * B * (NF * n_in * NF + n_in * n_hidden + n_hidden * n_out)),
        transcendentals=int(B * (n_hidden + n_out)),
        bytes_accessed=int(vecs.size * 4 + wint2.size * 2 + w1.size * 2
                           + w2.size * 2 + slab.size * 4 + B * PADW * 4))
    out = pl.pallas_call(
        head_kernel,
        out_shape=jax.ShapeDtypeStruct((B, PADW), jnp.float32),
        in_specs=[vmem_spec() for _ in range(5 + len(extra))],
        out_specs=vmem_spec(),
        compiler_params=pltpu.CompilerParams(vmem_limit_bytes=16 << 20),
        cost_estimate=cost2,
    )(vecs, wint2, w1, w2, slab, *extra)

    prop = out[:, :n_out]
    cate = out[:, n_out].astype(jnp.int32)
    return prop, cate


def _reference_forward(params, q_ids, a_ids, filter_windows, F, n_in, n_hidden, n_out):
    """Pure-JAX f32 reference of the same forward pass (for tolerance check)."""
    emb = params["embedding"]

    def feat(ids):
        xf = emb[ids]                                          # (B, H, Wd) f32
        outs = []
        for k, fh in enumerate(filter_windows):
            w = params["wconv"][k, :fh]                        # (fh, Wd, F)
            h_out = xf.shape[1] - fh + 1
            conv = jnp.zeros((xf.shape[0], h_out, F), jnp.float32)
            for dh in range(fh):
                conv = conv + jnp.einsum("bhw,wf->bhf", xf[:, dh:dh + h_out, :], w[dh])
            act = jnp.maximum(conv + params["bconv"][k][None, None, :], 0.0)
            outs.append(jnp.max(act, axis=1))
        return jnp.concatenate(outs, axis=1)

    qv, av = feat(q_ids), feat(a_ids)
    qa = jnp.einsum("bi,mij,bj->bm", qv, params["wint"], av)
    mean = qa.mean(0, keepdims=True)
    var = ((qa - mean) ** 2).mean(0, keepdims=True)
    bn = (qa - mean) * jax.lax.rsqrt(var + 1e-5) * params["gamma"] + params["beta"]
    h = jnp.tanh(bn @ params["w1"] + params["b1"])
    logits = h @ params["w2"] + params["b2"]
    return jax.nn.softmax(logits, axis=-1)


if __name__ == "__main__":
    # Small shapes consistent with the module.
    B, H, Wd = 2, 16, 32                     # batch, img_h (seq len), img_w (embed dim)
    V = 50                                   # vocab size
    filter_windows = (2, 3)                  # filter heights
    F = 4                                    # filter_num (feature maps per window)
    NF = len(filter_windows) * F             # num_feature_maps
    n_in, n_hidden, n_out = 16, 32, 3        # MLP sizes
    max_fh = max(filter_windows)

    key = jax.random.PRNGKey(0)
    ks = jax.random.split(key, 8)

    # Zero-pad conv weights along dh for windows shorter than max_fh (unused taps).
    wconv = jax.random.normal(ks[1], (len(filter_windows), max_fh, Wd, F),
                              jnp.float32) * 0.1
    fh_mask = np.zeros((len(filter_windows), max_fh, 1, 1), np.float32)
    for k_idx, fh in enumerate(filter_windows):
        fh_mask[k_idx, :fh] = 1.0
    wconv = wconv * jnp.asarray(fh_mask)

    params = {
        "embedding": jax.random.normal(ks[0], (V, Wd), jnp.float32) * 0.1,
        "wconv": wconv,
        "bconv": jax.random.normal(ks[2], (len(filter_windows), F), jnp.float32) * 0.1,
        "wint": jax.random.normal(ks[3], (n_in, NF, NF), jnp.float32) * 0.1,
        "gamma": jnp.ones((1, n_in), jnp.float32),
        "beta": jnp.zeros((1, n_in), jnp.float32),
        "w1": jax.random.normal(ks[4], (n_in, n_hidden), jnp.float32) * 0.1,
        "b1": jnp.zeros((1, n_hidden), jnp.float32),
        "w2": jax.random.normal(ks[5], (n_hidden, n_out), jnp.float32) * 0.1,
        "b2": jnp.zeros((1, n_out), jnp.float32),
    }

    q_ids = jax.random.randint(ks[6], (B, H), 0, V, dtype=jnp.int32)
    a_ids = jax.random.randint(ks[7], (B, H), 0, V, dtype=jnp.int32)

    prop, cate = qa_cnn_forward(params, q_ids, a_ids, drop_rate=0.0, seed=0,
                                filter_windows=filter_windows, filter_num=F,
                                n_in=n_in, n_hidden=n_hidden, n_out=n_out)
    prop = jax.block_until_ready(prop)
    cate = jax.block_until_ready(cate)

    assert prop.shape == (B, n_out) and cate.shape == (B,)
    assert np.allclose(np.asarray(prop).sum(axis=-1), 1.0, atol=1e-4)
    assert np.all(np.asarray(cate) == np.argmax(np.asarray(prop), axis=-1))

    # Pure-JAX f32 reference (bf16 kernel operands -> loose tolerance).
    prop_ref = np.asarray(_reference_forward(params, q_ids, a_ids, filter_windows,
                                             F, n_in, n_hidden, n_out))
    assert np.allclose(np.asarray(prop), prop_ref, atol=5e-2), (prop, prop_ref)

    print("KERNEL_OK")
</pallas_src>

<mosaic_0001>
module attributes {stable_mosaic.version = 11 : i64} {
  func.func @_conv_pool_kernel(%arg0: i32, %arg1: memref<4x16x32xbf16, #tpu.memory_space<vmem>>, %arg2: memref<32x640xbf16, #tpu.memory_space<vmem>>, %arg3: memref<2x128xf32, #tpu.memory_space<vmem>>, %arg4: memref<4x128xf32, #tpu.memory_space<vmem>>) attributes {dimension_semantics = [#tpu.dimension_semantics<parallel>], iteration_bounds = array<i64: 1>, scalar_prefetch = 0 : i64, scratch_operands = 0 : i64, tpu.core_type = #tpu.core_type<tc>, window_params = [{transform_indices = @transform_0, window_bounds = array<i64: 4, 16, 32>}, {pipeline_mode = #tpu.pipeline_mode<synchronous>, transform_indices = @transform_1, window_bounds = array<i64: 32, 640>}, {pipeline_mode = #tpu.pipeline_mode<synchronous>, transform_indices = @transform_2, window_bounds = array<i64: 2, 128>}, {transform_indices = @transform_3, window_bounds = array<i64: 4, 128>}]} {
    %c0 = arith.constant 0 : index
    %c0_0 = arith.constant 0 : index
    %c0_1 = arith.constant 0 : index
    %0 = vector.load %arg1[%c0, %c0_0, %c0_1] : memref<4x16x32xbf16, #tpu.memory_space<vmem>>, vector<4x16x32xbf16>
    %1 = vector.shape_cast %0 : vector<4x16x32xbf16> to vector<64x32xbf16>
    %c0_2 = arith.constant 0 : index
    %c0_3 = arith.constant 0 : index
    %2 = vector.load %arg2[%c0_2, %c0_3] : memref<32x640xbf16, #tpu.memory_space<vmem>>, vector<32x640xbf16>
    %cst = arith.constant dense<0.000000e+00> : vector<64x640xf32>
    %3 = tpu.matmul %1, %2, %cst {dimension_numbers = #tpu.dot_dimension_numbers<[1], [0], [0], [1], [0, 0, 1, 1], [], []>} : vector<64x32xbf16>, vector<32x640xbf16>, vector<64x640xf32> -> vector<64x640xf32>
    %c0_4 = arith.constant 0 : index
    %c0_5 = arith.constant 0 : index
    %4 = vector.load %arg3[%c0_4, %c0_5] : memref<2x128xf32, #tpu.memory_space<vmem>>, vector<2x128xf32>
    %5 = tpu.iota {dimensions = array<i32: 0>} : vector<64x128xi32>
    %c16_i32 = arith.constant 16 : i32
    %c0_i32 = arith.constant 0 : i32
    %6 = arith.cmpi eq, %c16_i32, %c0_i32 : i32
    %c1_i32 = arith.constant 1 : i32
    %7 = arith.select %6, %c1_i32, %c16_i32 : i32
    %8 = vector.broadcast %7 : i32 to vector<64x128xi32>
    %9 = arith.remsi %5, %8 : vector<64x128xi32>
    %c0_i32_6 = arith.constant 0 : i32
    %10 = vector.broadcast %c0_i32_6 : i32 to vector<64x128xi32>
    %11 = arith.cmpi ne, %9, %10 : vector<64x128xi32>
    %c0_i32_7 = arith.constant 0 : i32
    %12 = vector.broadcast %c0_i32_7 : i32 to vector<64x128xi32>
    %13 = arith.cmpi slt, %9, %12 : vector<64x128xi32>
    %c0_i32_8 = arith.constant 0 : i32
    %14 = arith.cmpi slt, %7, %c0_i32_8 : i32
    %15 = vector.broadcast %14 : i1 to vector<64x128xi1>
    %16 = vector.broadcast %15 : vector<64x128xi1> to vector<64x128xi1>
    %17 = arith.xori %13, %16 : vector<64x128xi1>
    %18 = arith.andi %17, %11 : vector<64x128xi1>
    %19 = vector.broadcast %7 : i32 to vector<64x128xi32>
    %20 = arith.addi %9, %19 : vector<64x128xi32>
    %21 = arith.select %18, %20, %9 : vector<64x128xi1>, vector<64x128xi32>
    %22 = vector.extract_strided_slice %3 {offsets = [0, 0], sizes = [64, 128], strides = [1, 1]} : vector<64x640xf32> to vector<64x128xf32>
    %23 = vector.extract_strided_slice %3 {offsets = [0, 128], sizes = [64, 128], strides = [1, 1]} : vector<64x640xf32> to vector<64x128xf32>
    %c63_i32 = arith.constant 63 : i32
    %24 = tpu.dynamic_rotate %23 by %c63_i32 dim 0 : vector<64x128xf32>, i32 -> vector<64x128xf32>
    %25 = arith.addf %22, %24 : vector<64x128xf32>
    %26 = vector.extract_strided_slice %4 {offsets = [0, 0], sizes = [1, 128], strides = [1, 1]} : vector<2x128xf32> to vector<1x128xf32>
    %27 = vector.broadcast %26 : vector<1x128xf32> to vector<64x128xf32>
    %28 = arith.addf %25, %27 : vector<64x128xf32>
    %cst_9 = arith.constant 0.000000e+00 : f32
    %29 = vector.broadcast %cst_9 : f32 to vector<64x128xf32>
    %30 = arith.maximumf %28, %29 : vector<64x128xf32>
    %c15_i32 = arith.constant 15 : i32
    %31 = vector.broadcast %c15_i32 : i32 to vector<64x128xi32>
    %32 = arith.cmpi slt, %21, %31 : vector<64x128xi32>
    %cst_10 = arith.constant 0.000000e+00 : f32
    %33 = vector.broadcast %cst_10 : f32 to vector<64x128xf32>
    %34 = arith.select %32, %30, %33 : vector<64x128xi1>, vector<64x128xf32>
    %35 = vector.shape_cast %34 : vector<64x128xf32> to vector<4x16x128xf32>
    %cst_11 = arith.constant dense<0xFF800000> : vector<4x128xf32>
    %36 = vector.multi_reduction <maximumf>, %35, %cst_11 [1] : vector<4x16x128xf32> to vector<4x128xf32>
    %37 = vector.extract_strided_slice %36 {offsets = [0, 0], sizes = [4, 4], strides = [1, 1]} : vector<4x128xf32> to vector<4x4xf32>
    %38 = vector.extract_strided_slice %3 {offsets = [0, 256], sizes = [64, 128], strides = [1, 1]} : vector<64x640xf32> to vector<64x128xf32>
    %39 = vector.extract_strided_slice %3 {offsets = [0, 384], sizes = [64, 128], strides = [1, 1]} : vector<64x640xf32> to vector<64x128xf32>
    %c63_i32_12 = arith.constant 63 : i32
    %40 = tpu.dynamic_rotate %39 by %c63_i32_12 dim 0 : vector<64x128xf32>, i32 -> vector<64x128xf32>
    %41 = arith.addf %38, %40 : vector<64x128xf32>
    %42 = vector.extract_strided_slice %3 {offsets = [0, 512], sizes = [64, 128], strides = [1, 1]} : vector<64x640xf32> to vector<64x128xf32>
    %c62_i32 = arith.constant 62 : i32
    %43 = tpu.dynamic_rotate %42 by %c62_i32 dim 0 : vector<64x128xf32>, i32 -> vector<64x128xf32>
    %44 = arith.addf %41, %43 : vector<64x128xf32>
    %45 = vector.extract_strided_slice %4 {offsets = [1, 0], sizes = [1, 128], strides = [1, 1]} : vector<2x128xf32> to vector<1x128xf32>
    %46 = vector.broadcast %45 : vector<1x128xf32> to vector<64x128xf32>
    %47 = arith.addf %44, %46 : vector<64x128xf32>
    %cst_13 = arith.constant 0.000000e+00 : f32
    %48 = vector.broadcast %cst_13 : f32 to vector<64x128xf32>
    %49 = arith.maximumf %47, %48 : vector<64x128xf32>
    %c14_i32 = arith.constant 14 : i32
    %50 = vector.broadcast %c14_i32 : i32 to vector<64x128xi32>
    %51 = arith.cmpi slt, %21, %50 : vector<64x128xi32>
    %cst_14 = arith.constant 0.000000e+00 : f32
    %52 = vector.broadcast %cst_14 : f32 to vector<64x128xf32>
    %53 = arith.select %51, %49, %52 : vector<64x128xi1>, vector<64x128xf32>
    %54 = vector.shape_cast %53 : vector<64x128xf32> to vector<4x16x128xf32>
    %cst_15 = arith.constant dense<0xFF800000> : vector<4x128xf32>
    %55 = vector.multi_reduction <maximumf>, %54, %cst_15 [1] : vector<4x16x128xf32> to vector<4x128xf32>
    %56 = vector.extract_strided_slice %55 {offsets = [0, 0], sizes = [4, 4], strides = [1, 1]} : vector<4x128xf32> to vector<4x4xf32>
    %57 = tpu.concatenate %37, %56 in 1 : vector<4x4xf32>, vector<4x4xf32> -> vector<4x8xf32>
    %cst_16 = arith.constant 0.000000e+00 : f32
    %58 = vector.broadcast %cst_16 : f32 to vector<4x120xf32>
    %59 = tpu.concatenate %57, %58 in 1 : vector<4x8xf32>, vector<4x120xf32> -> vector<4x128xf32>
    %c0_17 = arith.constant 0 : index
    %c0_18 = arith.constant 0 : index
    %60 = vector.load %arg4[%c0_17, %c0_18] : memref<4x128xf32, #tpu.memory_space<vmem>>, vector<4x128xf32>
    tpu.vector_store %arg4[%c0_17, %c0_18], %59 {strides = array<i32>} : memref<4x128xf32, #tpu.memory_space<vmem>>, vector<4x128xf32>,
    return
  }
  func.func @transform_0(%arg0: i32) -> (i32, i32, i32) {
    %c0_i32 = arith.constant 0 : i32
    %c0_i32_0 = arith.constant 0 : i32
    %c0_i32_1 = arith.constant 0 : i32
    return %arg0, %c0_i32, %c0_i32_0 : i32, i32, i32
  }
  func.func @transform_1(%arg0: i32) -> (i32, i32) {
    %c0_i32 = arith.constant 0 : i32
    %c0_i32_0 = arith.constant 0 : i32
    %c0_i32_1 = arith.constant 0 : i32
    return %c0_i32, %c0_i32_0 : i32, i32
  }
  func.func @transform_2(%arg0: i32) -> (i32, i32) {
    %c0_i32 = arith.constant 0 : i32
    %c0_i32_0 = arith.constant 0 : i32
    %c0_i32_1 = arith.constant 0 : i32
    return %c0_i32, %c0_i32_0 : i32, i32
  }
  func.func @transform_3(%arg0: i32) -> (i32, i32) {
    %c0_i32 = arith.constant 0 : i32
    %c0_i32_0 = arith.constant 0 : i32
    return %arg0, %c0_i32 : i32, i32
  }
}

</mosaic_0001>

<llo_original>
// kernel: tpu_custom_call.1
$region0: #{tpu_custom_call.1}
  #allocation0 [shape = 'u32[]', space=smem, size = 0x4, offset = 0x4, fixed_abs, tag = 'smem constant byte address 0x4 - core index']
  #allocation1 [shape = 'u32[144,128]{1,0:T(1,128)}', space=vmem, size = 0x12000, scoped, tag = 'internal scratch']
  %s0 = inlined_call_operand.hbm [shape: bf16[4,16,32], index: 0, kind: input, shape index: {}]
  %s1 = inlined_call_operand.hbm [shape: bf16[32,640], index: 1, kind: input, shape index: {}]
  %s2 = inlined_call_operand.vmem [shape: f32[2,128], index: 2, kind: input, shape index: {}]
  %s3 = inlined_call_operand.hbm [shape: f32[4,128], index: 3, kind: output, shape index: {}]
  %s4 = sld [smem:[#allocation0]]
  $region30: #{tpu_custom_call.1} parent=0
    _
  %s6 = ssub.s32 1, %s4
  %s7 = scalar_select 0, %s6, %s4
  $region1: #{tpu_custom_call.1} parent=0
    #allocation2 [shape = 'u8[16384]{0}', space=vmem, size = 0x4000, scoped, tag = 'input window, operand 0, single buffered']
    #allocation3 [shape = 's32[1]{0}', space=sflag, size = 0x4, scoped, tag = 'scoped memory for tpu_custom_call.1']
    #allocation4 [shape = 's32[1]{0}', space=sflag, size = 0x4, scoped, tag = 'scoped memory for tpu_custom_call.1']
    #allocation5 [shape = 'u8[40960]{0}', space=vmem, size = 0xa000, scoped, tag = 'input window, operand 1, single buffered']
    #allocation6 [shape = 's32[1]{0}', space=sflag, size = 0x4, scoped, tag = 'scoped memory for tpu_custom_call.1']
    #allocation7 [shape = 'u8[2048]{0}', space=vmem, size = 0x800, scoped, tag = 'output window, operand 0, single buffered']
    %8 = vsyncpa [#allocation3], 0
    %9 = vsyncpa [#allocation6], 0
    %10 = vsyncpa [#allocation4], 0
    // Predicated region
    $region2: #{tpu_custom_call.1} parent=1 // pred_check
      _
    $region3: #{tpu_custom_call.1} parent=1 // pred_check_branch
      %12 = sbr.rel (0) target = $region5
    $region4: #{tpu_custom_call.1} parent=1 // pred_region
      %s14 = ssub.s32 512, 512
      %15 = vsyncadd [#allocation3], %s14
      %s16 = sshll.u32 [#allocation2], 4
      %s17 = int_to_ptr.vmem [resolvable:$true] %s16
      %22 = dma.hbm_to_vmem [thread:$0]  %s0, 512, %s17, [#allocation3], 64, 64, 4
    $region5: #{tpu_custom_call.1} parent=1 // pred_fallthru
      _
    // Predicated region
    $region6: #{tpu_custom_call.1} parent=1 // pred_check
      _
    $region7: #{tpu_custom_call.1} parent=1 // pred_check_branch
      %24 = sbr.rel (0) target = $region9
    $region8: #{tpu_custom_call.1} parent=1 // pred_region
      %s26 = ssub.s32 1280, 1280
      %27 = vsyncadd [#allocation6], %s26
      %s28 = sshll.u32 [#allocation5], 4
      %s29 = int_to_ptr.vmem [resolvable:$true] %s28
      %34 = dma.hbm_to_vmem [thread:$0]  %s1, 1280, %s29, [#allocation6], 320, 320, 20
    $region9: #{tpu_custom_call.1} parent=1 // pred_fallthru
      _
    // Predicated region
    $region10: #{tpu_custom_call.1} parent=1 // pred_check
      _
    $region11: #{tpu_custom_call.1} parent=1 // pred_check_branch
      %36 = sbr.rel (0) target = $region13
    $region12: #{tpu_custom_call.1} parent=1 // pred_region
      _
    $region13: #{tpu_custom_call.1} parent=1 // pred_fallthru
      _
    // Predicated region
    $region14: #{tpu_custom_call.1} parent=1 // pred_check
      _
    $region15: #{tpu_custom_call.1} parent=1 // pred_check_branch
      %38 = sbr.rel (0) target = $region17
    $region16: #{tpu_custom_call.1} parent=1 // pred_region
      %39 = dma.done [#allocation3], 512
    $region17: #{tpu_custom_call.1} parent=1 // pred_fallthru
      _
    // Predicated region
    $region18: #{tpu_custom_call.1} parent=1 // pred_check
      _
    $region19: #{tpu_custom_call.1} parent=1 // pred_check_branch
      %41 = sbr.rel (0) target = $region21
    $region20: #{tpu_custom_call.1} parent=1 // pred_region
      %42 = dma.done [#allocation6], 1280
    $region21: #{tpu_custom_call.1} parent=1 // pred_fallthru
      _
    %v44 = vld [vmem:[#allocation2] sm:$0xf]
    %v45 = vld [vmem:[#allocation2 + $0x4] sm:$0xf]
    %v46 = vld [vmem:[#allocation2 + $0x8] sm:$0xf]
    %v47 = vld [vmem:[#allocation2 + $0xc] sm:$0xf]
    %v48 = vld [vmem:[#allocation2 + $0x10] sm:$0xf]
    %v49 = vld [vmem:[#allocation2 + $0x14] sm:$0xf]
    %v50 = vld [vmem:[#allocation2 + $0x18] sm:$0xf]
    %v51 = vld [vmem:[#allocation2 + $0x1c] sm:$0xf]
    %v52 = vld [vmem:[#allocation5] sm:$0xff]
    %v53 = vld [vmem:[#allocation5 + $0x8] sm:$0xff]
    %v54 = vld [vmem:[#allocation5 + $0x10] sm:$0xf]
    %v55 = vld [vmem:[#allocation5 + $0x14] sm:$0xff]
    %v56 = vld [vmem:[#allocation5 + $0x1c] sm:$0xff]
    %v57 = vld [vmem:[#allocation5 + $0x24] sm:$0xf]
    %v58 = vld [vmem:[#allocation5 + $0x28] sm:$0xff]
    %v59 = vld [vmem:[#allocation5 + $0x30] sm:$0xff]
    %v60 = vld [vmem:[#allocation5 + $0x38] sm:$0xf]
    %v61 = vld [vmem:[#allocation5 + $0x3c] sm:$0xff]
    %v62 = vld [vmem:[#allocation5 + $0x44] sm:$0xff]
    %v63 = vld [vmem:[#allocation5 + $0x4c] sm:$0xf]
    %v72 = vunpack.c.l.b16 %v44
    %v73 = vunpack.c.l.b16 %v45
    %v74 = vunpack.c.l.b16 %v46
    %v75 = vunpack.c.l.b16 %v47
    %v76 = vunpack.c.l.b16 %v48
    %v77 = vunpack.c.l.b16 %v49
    %v78 = vunpack.c.l.b16 %v50
    %v79 = vunpack.c.l.b16 %v51
    %v80 = vpack.c.b16 %v73, %v72
    %v81 = vpack.c.b16 %v75, %v74
    %v82 = vpack.c.b16 %v77, %v76
    %v83 = vpack.c.b16 %v79, %v78
    %v96 = vunpack.c.l.b16 %v52
    %v97 = vunpack.c.h.b16 %v52
    %v98 = vunpack.c.l.b16 %v53
    %v99 = vunpack.c.h.b16 %v53
    %v100 = vunpack.c.l.b16 %v54
    %v101 = vunpack.c.l.b16 %v55
    %v102 = vunpack.c.h.b16 %v55
    %v103 = vunpack.c.l.b16 %v56
    %v104 = vunpack.c.h.b16 %v56
    %v105 = vunpack.c.l.b16 %v57
    %v106 = vunpack.c.l.b16 %v58
    %v107 = vunpack.c.h.b16 %v58
    %v108 = vunpack.c.l.b16 %v59
    %v109 = vunpack.c.h.b16 %v59
    %v110 = vunpack.c.l.b16 %v60
    %v111 = vunpack.c.l.b16 %v61
    %v112 = vunpack.c.h.b16 %v61
    %v113 = vunpack.c.l.b16 %v62
    %v114 = vunpack.c.h.b16 %v62
    %v115 = vunpack.c.l.b16 %v63
    %v116 = vpack.c.b16 %v101, %v96
    %v117 = vpack.c.b16 %v102, %v97
    %v118 = vpack.c.b16 %v103, %v98
    %v119 = vpack.c.b16 %v104, %v99
    %v120 = vpack.c.b16 %v105, %v100
    %v121 = vpack.c.b16 %v111, %v106
    %v122 = vpack.c.b16 %v112, %v107
    %v123 = vpack.c.b16 %v113, %v108
    %v124 = vpack.c.b16 %v114, %v109
    %v125 = vpack.c.b16 %v115, %v110
    %vm136 = vcmask 261120
    %v138 = vsel %vm136, %v80, 0
    %v141 = vsel %vm136, %v81, 0
    %v144 = vsel %vm136, %v82, 0
    %v147 = vsel %vm136, %v83, 0
    %149 = vmatprep.subr.bf16.mxu0 %v117
    %150 = vmatpush1.bf16.msra.mxu0 %v116
    %151 = vmatprep.subr.bf16.mxu0 %v122
    %152 = vmatpush1.bf16.msra.mxu0 %v121
    %153 = vmatprep.subr.bf16.mxu0 0
    %154 = vmatpush1.bf16.msra.mxu0 0
    %155 = vmatprep.subr.bf16.mxu0 0
    %156 = vmatpush1.bf16.msra.mxu0 0
    %157 = vmatprep.subr.bf16.mxu0 0
    %158 = vmatpush1.bf16.msra.mxu0 0
    %159 = vmatprep.subr.bf16.mxu0 0
    %160 = vmatpush1.bf16.msra.mxu0 0
    %161 = vmatprep.subr.bf16.mxu0 0
    %162 = vmatpush1.bf16.msra.mxu0 0
    %163 = vmatprep.subr.bf16.mxu0 0
    %164 = vmatpush1.bf16.msra.mxu0 0
    %165 = vmatprep.subr.bf16.mxu0 0
    %166 = vmatpush1.bf16.msra.mxu0 0
    %167 = vmatprep.subr.bf16.mxu0 0
    %168 = vmatpush1.bf16.msra.mxu0 0
    %169 = vmatprep.subr.bf16.mxu0 0
    %170 = vmatpush1.bf16.msra.mxu0 0
    %171 = vmatprep.subr.bf16.mxu0 0
    %172 = vmatpush1.bf16.msra.mxu0 0
    %173 = vmatprep.subr.bf16.mxu0 0
    %174 = vmatpush1.bf16.msra.mxu0 0
    %175 = vmatprep.subr.bf16.mxu0 0
    %176 = vmatpush1.bf16.msra.mxu0 0
    %177 = vmatprep.subr.bf16.mxu0 0
    %178 = vmatpush1.bf16.msra.mxu0 0
    %179 = vmatprep.subr.bf16.mxu0 0
    %180 = vmatpush1.bf16.msra.mxu0 0
    %181 = vmatprep.mubr.bf16.mxu0 0
    %182 = vmatmul.mubr.bf16.gmra.mrb[0].mxu0 %v138
    %v183 = vpop.f32.mrb[0].mxu0
    %v184 = vadd.f32 0.0, %v183
    %v185 = vpop.f32.mrb[0].mxu0
    %v186 = vadd.f32 0.0, %v185
    %v187 = vpop.f32.mrb[0].mxu0
    %v188 = vadd.f32 0.0, %v187
    %v189 = vpop.f32.mrb[0].mxu0
    %v190 = vadd.f32 0.0, %v189
    %191 = vmatprep.mubr.bf16.mxu0 0
    %192 = vmatmul.mubr.bf16.gmra.mrb[0].mxu0 %v141
    %v193 = vpop.f32.mrb[0].mxu0
    %v194 = vadd.f32 0.0, %v193
    %v195 = vpop.f32.mrb[0].mxu0
    %v196 = vadd.f32 0.0, %v195
    %v197 = vpop.f32.mrb[0].mxu0
    %v198 = vadd.f32 0.0, %v197
    %v199 = vpop.f32.mrb[0].mxu0
    %v200 = vadd.f32 0.0, %v199
    %201 = vmatprep.mubr.bf16.mxu0 0
    %202 = vmatmul.mubr.bf16.gmra.mrb[0].mxu0 %v144
    %v203 = vpop.f32.mrb[0].mxu0
    %v204 = vadd.f32 0.0, %v203
    %v205 = vpop.f32.mrb[0].mxu0
    %v206 = vadd.f32 0.0, %v205
    %v207 = vpop.f32.mrb[0].mxu0
    %v208 = vadd.f32 0.0, %v207
    %v209 = vpop.f32.mrb[0].mxu0
    %v210 = vadd.f32 0.0, %v209
    %211 = vmatprep.mubr.bf16.mxu0 0
    %212 = vmatmul.mubr.bf16.gmra.mrb[0].mxu0 %v147
    %v213 = vpop.f32.mrb[0].mxu0
    %v214 = vadd.f32 0.0, %v213
    %v215 = vpop.f32.mrb[0].mxu0
    %v216 = vadd.f32 0.0, %v215
    %v217 = vpop.f32.mrb[0].mxu0
    %v218 = vadd.f32 0.0, %v217
    %v219 = vpop.f32.mrb[0].mxu0
    %v220 = vadd.f32 0.0, %v219
    %221 = vdwg.mxu0
    %222 = vmatprep.subr.bf16.mxu0 %v119
    %223 = vmatpush1.bf16.msra.mxu0 %v118
    %224 = vmatprep.subr.bf16.mxu0 %v124
    %225 = vmatpush1.bf16.msra.mxu0 %v123
    %226 = vmatprep.subr.bf16.mxu0 0
    %227 = vmatpush1.bf16.msra.mxu0 0
    %228 = vmatprep.subr.bf16.mxu0 0
    %229 = vmatpush1.bf16.msra.mxu0 0
    %230 = vmatprep.subr.bf16.mxu0 0
    %231 = vmatpush1.bf16.msra.mxu0 0
    %232 = vmatprep.subr.bf16.mxu0 0
    %233 = vmatpush1.bf16.msra.mxu0 0
    %234 = vmatprep.subr.bf16.mxu0 0
    %235 = vmatpush1.bf16.msra.mxu0 0
    %236 = vmatprep.subr.bf16.mxu0 0
    %237 = vmatpush1.bf16.msra.mxu0 0
    %238 = vmatprep.subr.bf16.mxu0 0
    %239 = vmatpush1.bf16.msra.mxu0 0
    %240 = vmatprep.subr.bf16.mxu0 0
    %241 = vmatpush1.bf16.msra.mxu0 0
    %242 = vmatprep.subr.bf16.mxu0 0
    %243 = vmatpush1.bf16.msra.mxu0 0
    %244 = vmatprep.subr.bf16.mxu0 0
    %245 = vmatpush1.bf16.msra.mxu0 0
    %246 = vmatprep.subr.bf16.mxu0 0
    %247 = vmatpush1.bf16.msra.mxu0 0
    %248 = vmatprep.subr.bf16.mxu0 0
    %249 = vmatpush1.bf16.msra.mxu0 0
    %250 = vmatprep.subr.bf16.mxu0 0
    %251 = vmatpush1.bf16.msra.mxu0 0
    %252 = vmatprep.subr.bf16.mxu0 0
    %253 = vmatpush1.bf16.msra.mxu0 0
    %254 = vmatprep.mubr.bf16.mxu0 0
    %255 = vmatmul.mubr.bf16.gmra.mrb[0].mxu0 %v138
    %v256 = vpop.f32.mrb[0].mxu0
    %v257 = vadd.f32 0.0, %v256
    %v258 = vpop.f32.mrb[0].mxu0
    %v259 = vadd.f32 0.0, %v258
    %v260 = vpop.f32.mrb[0].mxu0
    %v261 = vadd.f32 0.0, %v260
    %v262 = vpop.f32.mrb[0].mxu0
    %v263 = vadd.f32 0.0, %v262
    %264 = vmatprep.mubr.bf16.mxu0 0
    %265 = vmatmul.mubr.bf16.gmra.mrb[0].mxu0 %v141
    %v266 = vpop.f32.mrb[0].mxu0
    %v267 = vadd.f32 0.0, %v266
    %v268 = vpop.f32.mrb[0].mxu0
    %v269 = vadd.f32 0.0, %v268
    %v270 = vpop.f32.mrb[0].mxu0
    %v271 = vadd.f32 0.0, %v270
    %v272 = vpop.f32.mrb[0].mxu0
    %v273 = vadd.f32 0.0, %v272
    %274 = vmatprep.mubr.bf16.mxu0 0
    %275 = vmatmul.mubr.bf16.gmra.mrb[0].mxu0 %v144
    %v276 = vpop.f32.mrb[0].mxu0
    %v277 = vadd.f32 0.0, %v276
    %v278 = vpop.f32.mrb[0].mxu0
    %v279 = vadd.f32 0.0, %v278
    %v280 = vpop.f32.mrb[0].mxu0
    %v281 = vadd.f32 0.0, %v280
    %v282 = vpop.f32.mrb[0].mxu0
    %v283 = vadd.f32 0.0, %v282
    %284 = vmatprep.mubr.bf16.mxu0 0
    %285 = vmatmul.mubr.bf16.gmra.mrb[0].mxu0 %v147
    %v286 = vpop.f32.mrb[0].mxu0
    %v287 = vadd.f32 0.0, %v286
    %v288 = vpop.f32.mrb[0].mxu0
    %v289 = vadd.f32 0.0, %v288
    %v290 = vpop.f32.mrb[0].mxu0
    %v291 = vadd.f32 0.0, %v290
    %v292 = vpop.f32.mrb[0].mxu0
    %v293 = vadd.f32 0.0, %v292
    %294 = vdwg.mxu0
    %295 = vmatprep.subr.bf16.mxu0 0
    %296 = vmatpush1.bf16.msra.mxu0 %v120
    %297 = vmatprep.subr.bf16.mxu0 0
    %298 = vmatpush1.bf16.msra.mxu0 %v125
    %299 = vmatprep.subr.bf16.mxu0 0
    %300 = vmatpush1.bf16.msra.mxu0 0
    %301 = vmatprep.subr.bf16.mxu0 0
    %302 = vmatpush1.bf16.msra.mxu0 0
    %303 = vmatprep.subr.bf16.mxu0 0
    %304 = vmatpush1.bf16.msra.mxu0 0
    %305 = vmatprep.subr.bf16.mxu0 0
    %306 = vmatpush1.bf16.msra.mxu0 0
    %307 = vmatprep.subr.bf16.mxu0 0
    %308 = vmatpush1.bf16.msra.mxu0 0
    %309 = vmatprep.subr.bf16.mxu0 0
    %310 = vmatpush1.bf16.msra.mxu0 0
    %311 = vmatprep.subr.bf16.mxu0 0
    %312 = vmatpush1.bf16.msra.mxu0 0
    %313 = vmatprep.subr.bf16.mxu0 0
    %314 = vmatpush1.bf16.msra.mxu0 0
    %315 = vmatprep.subr.bf16.mxu0 0
    %316 = vmatpush1.bf16.msra.mxu0 0
    %317 = vmatprep.subr.bf16.mxu0 0
    %318 = vmatpush1.bf16.msra.mxu0 0
    %319 = vmatprep.subr.bf16.mxu0 0
    %320 = vmatpush1.bf16.msra.mxu0 0
    %321 = vmatprep.subr.bf16.mxu0 0
    %322 = vmatpush1.bf16.msra.mxu0 0
    %323 = vmatprep.subr.bf16.mxu0 0
    %324 = vmatpush1.bf16.msra.mxu0 0
    %325 = vmatprep.subr.bf16.mxu0 0
    %326 = vmatpush1.bf16.msra.mxu0 0
    %327 = vmatprep.mubr.bf16.mxu0 0
    %328 = vmatmul.mubr.bf16.gmra.mrb[0].mxu0 %v138
    %v329 = vpop.f32.mrb[0].mxu0
    %v330 = vadd.f32 0.0, %v329
    %v331 = vpop.f32.mrb[0].mxu0
    %v332 = vpop.f32.mrb[0].mxu0
    %v333 = vadd.f32 0.0, %v332
    %v334 = vpop.f32.mrb[0].mxu0
    %335 = vmatprep.mubr.bf16.mxu0 0
    %336 = vmatmul.mubr.bf16.gmra.mrb[0].mxu0 %v141
    %v337 = vpop.f32.mrb[0].mxu0
    %v338 = vadd.f32 0.0, %v337
    %v339 = vpop.f32.mrb[0].mxu0
    %v340 = vpop.f32.mrb[0].mxu0
    %v341 = vadd.f32 0.0, %v340
    %v342 = vpop.f32.mrb[0].mxu0
    %343 = vmatprep.mubr.bf16.mxu0 0
    %344 = vmatmul.mubr.bf16.gmra.mrb[0].mxu0 %v144
    %v345 = vpop.f32.mrb[0].mxu0
    %v346 = vadd.f32 0.0, %v345
    %v347 = vpop.f32.mrb[0].mxu0
    %v348 = vpop.f32.mrb[0].mxu0
    %v349 = vadd.f32 0.0, %v348
    %v350 = vpop.f32.mrb[0].mxu0
    %351 = vmatprep.mubr.bf16.mxu0 0
    %352 = vmatmul.mubr.bf16.gmra.mrb[0].mxu0 %v147
    %v353 = vpop.f32.mrb[0].mxu0
    %v354 = vadd.f32 0.0, %v353
    %v355 = vpop.f32.mrb[0].mxu0
    %v356 = vpop.f32.mrb[0].mxu0
    %v357 = vadd.f32 0.0, %v356
    %v358 = vpop.f32.mrb[0].mxu0
    %359 = vdwg.mxu0
    %v360 = vld [vmem:[%s2] sm:$0x3]
    %v361 = vlaneseq
    %v362 = vshrl.u32 %v361, 7
    %v363 = vadd.s32 %v362, 8
    %v364 = vadd.s32 %v362, 16
    %v365 = vadd.s32 %v362, 24
    %v366 = vadd.s32 %v362, 32
    %v367 = vadd.s32 %v362, 40
    %v368 = vadd.s32 %v362, 48
    %v369 = vadd.s32 %v362, 56
    %vm370 = vcmp.lt.s32.totalorder %v362, 0
    %v371 = vsub.s32 0, %v362
    %v372 = vsel %vm370, %v371, %v362
    %v373 = vshrl.u32 %v372, 4
    %v374 = vand.u32 %v372, 15
    %v375 = vsub.s32 0, %v374
    %v376 = vsel %vm370, %v375, %v374
    %vm377 = vcmp.lt.s32.totalorder %v363, 0
    %v378 = vsub.s32 0, %v363
    %v379 = vsel %vm377, %v378, %v363
    %v380 = vshrl.u32 %v379, 4
    %v381 = vand.u32 %v379, 15
    %v382 = vsub.s32 0, %v381
    %v383 = vsel %vm377, %v382, %v381
    %vm384 = vcmp.lt.s32.totalorder %v364, 0
    %v385 = vsub.s32 0, %v364
    %v386 = vsel %vm384, %v385, %v364
    %v387 = vshrl.u32 %v386, 4
    %v388 = vand.u32 %v386, 15
    %v389 = vsub.s32 0, %v388
    %v390 = vsel %vm384, %v389, %v388
    %vm391 = vcmp.lt.s32.totalorder %v365, 0
    %v392 = vsub.s32 0, %v365
    %v393 = vsel %vm391, %v392, %v365
    %v394 = vshrl.u32 %v393, 4
    %v395 = vand.u32 %v393, 15
    %v396 = vsub.s32 0, %v395
    %v397 = vsel %vm391, %v396, %v395
    %vm398 = vcmp.lt.s32.totalorder %v366, 0
    %v399 = vsub.s32 0, %v366
    %v400 = vsel %vm398, %v399, %v366
    %v401 = vshrl.u32 %v400, 4
    %v402 = vand.u32 %v400, 15
    %v403 = vsub.s32 0, %v402
    %v404 = vsel %vm398, %v403, %v402
    %vm405 = vcmp.lt.s32.totalorder %v367, 0
    %v406 = vsub.s32 0, %v367
    %v407 = vsel %vm405, %v406, %v367
    %v408 = vshrl.u32 %v407, 4
    %v409 = vand.u32 %v407, 15
    %v410 = vsub.s32 0, %v409
    %v411 = vsel %vm405, %v410, %v409
    %vm412 = vcmp.lt.s32.totalorder %v368, 0
    %v413 = vsub.s32 0, %v368
    %v414 = vsel %vm412, %v413, %v368
    %v415 = vshrl.u32 %v414, 4
    %v416 = vand.u32 %v414, 15
    %v417 = vsub.s32 0, %v416
    %v418 = vsel %vm412, %v417, %v416
    %vm419 = vcmp.lt.s32.totalorder %v369, 0
    %v420 = vsub.s32 0, %v369
    %v421 = vsel %vm419, %v420, %v369
    %v422 = vshrl.u32 %v421, 4
    %v423 = vand.u32 %v421, 15
    %v424 = vsub.s32 0, %v423
    %v425 = vsel %vm419, %v424, %v423
    %vm426 = vcmp.ne.s32.totalorder %v376, 0
    %vm427 = vcmp.ne.s32.totalorder %v383, 0
    %vm428 = vcmp.ne.s32.totalorder %v390, 0
    %vm429 = vcmp.ne.s32.totalorder %v397, 0
    %vm430 = vcmp.ne.s32.totalorder %v404, 0
    %vm431 = vcmp.ne.s32.totalorder %v411, 0
    %vm432 = vcmp.ne.s32.totalorder %v418, 0
    %vm433 = vcmp.ne.s32.totalorder %v425, 0
    %vm434 = vcmp.lt.s32.totalorder %v376, 0
    %vm435 = vcmp.lt.s32.totalorder %v383, 0
    %vm436 = vcmp.lt.s32.totalorder %v390, 0
    %vm437 = vcmp.lt.s32.totalorder %v397, 0
    %vm438 = vcmp.lt.s32.totalorder %v404, 0
    %vm439 = vcmp.lt.s32.totalorder %v411, 0
    %vm440 = vcmp.lt.s32.totalorder %v418, 0
    %vm441 = vcmp.lt.s32.totalorder %v425, 0
    %vm442 = vmand %vm434, %vm426
    %vm443 = vmand %vm435, %vm427
    %vm444 = vmand %vm436, %vm428
    %vm445 = vmand %vm437, %vm429
    %vm446 = vmand %vm438, %vm430
    %vm447 = vmand %vm439, %vm431
    %vm448 = vmand %vm440, %vm432
    %vm449 = vmand %vm441, %vm433
    %v450 = vadd.s32 %v376, 16
    %v451 = vadd.s32 %v383, 16
    %v452 = vadd.s32 %v390, 16
    %v453 = vadd.s32 %v397, 16
    %v454 = vadd.s32 %v404, 16
    %v455 = vadd.s32 %v411, 16
    %v456 = vadd.s32 %v418, 16
    %v457 = vadd.s32 %v425, 16
    %v458 = vsel %vm442, %v450, %v376
    %v459 = vsel %vm443, %v451, %v383
    %v460 = vsel %vm444, %v452, %v390
    %v461 = vsel %vm445, %v453, %v397
    %v462 = vsel %vm446, %v454, %v404
    %v463 = vsel %vm447, %v455, %v411
    %v464 = vsel %vm448, %v456, %v418
    %v465 = vsel %vm449, %v457, %v425
    %v466 = vrot.slane %v186, 1
    %v467 = vrot.slane %v190, 1
    %v468 = vrot.slane %v196, 1
    %v469 = vrot.slane %v200, 1
    %v470 = vrot.slane %v206, 1
    %v471 = vrot.slane %v210, 1
    %v472 = vrot.slane %v216, 1
    %v473 = vrot.slane %v220, 1
    %vm474 = vcmp.lt.s32.totalorder %v362, 7
    %v475 = vsel %vm474, %v472, %v473
    %v476 = vsel %vm474, %v471, %v472
    %v477 = vsel %vm474, %v470, %v471
    %v478 = vsel %vm474, %v469, %v470
    %v479 = vsel %vm474, %v468, %v469
    %v480 = vsel %vm474, %v467, %v468
    %v481 = vsel %vm474, %v466, %v467
    %v482 = vsel %vm474, %v473, %v466
    %v483 = vadd.f32 %v184, %v481
    %v484 = vadd.f32 %v188, %v480
    %v485 = vadd.f32 %v194, %v479
    %v486 = vadd.f32 %v198, %v478
    %v487 = vadd.f32 %v204, %v477
    %v488 = vadd.f32 %v208, %v476
    %v489 = vadd.f32 %v214, %v475
    %v490 = vadd.f32 %v218, %v482
    %v491 = vlaneseq
    %v492 = vshrl.u32 %v491, 7
    %v493 = vsub.s32 0, %v492
    %v494 = vrot.slane %v360, %v493
    %v495 = vadd.f32 %v483, %v494
    %v496 = vadd.f32 %v484, %v494
    %v497 = vadd.f32 %v485, %v494
    %v498 = vadd.f32 %v486, %v494
    %v499 = vadd.f32 %v487, %v494
    %v500 = vadd.f32 %v488, %v494
    %v501 = vadd.f32 %v489, %v494
    %v502 = vadd.f32 %v490, %v494
    %v503 = vmax.f32 %v495, 0.0
    %v504 = vmax.f32 %v496, 0.0
    %v505 = vmax.f32 %v497, 0.0
    %v506 = vmax.f32 %v498, 0.0
    %v507 = vmax.f32 %v499, 0.0
    %v508 = vmax.f32 %v500, 0.0
    %v509 = vmax.f32 %v501, 0.0
    %v510 = vmax.f32 %v502, 0.0
    %vm511 = vcmp.lt.s32.totalorder %v458, 15
    %vm512 = vcmp.lt.s32.totalorder %v459, 15
    %vm513 = vcmp.lt.s32.totalorder %v460, 15
    %vm514 = vcmp.lt.s32.totalorder %v461, 15
    %vm515 = vcmp.lt.s32.totalorder %v462, 15
    %vm516 = vcmp.lt.s32.totalorder %v463, 15
    %vm517 = vcmp.lt.s32.totalorder %v464, 15
    %vm518 = vcmp.lt.s32.totalorder %v465, 15
    %v519 = vsel %vm511, %v503, 0.0
    %v520 = vsel %vm512, %v504, 0.0
    %v521 = vsel %vm513, %v505, 0.0
    %v522 = vsel %vm514, %v506, 0.0
    %v523 = vsel %vm515, %v507, 0.0
    %v524 = vsel %vm516, %v508, 0.0
    %v525 = vsel %vm517, %v509, 0.0
    %v526 = vsel %vm518, %v510, 0.0
    %v527 = vmax.f32 %v519, %v520
    %v528 = vrot.slane %v527, 4
    %v529 = vmax.f32 %v527, %v528
    %v530 = vrot.slane %v529, 2
    %v531 = vmax.f32 %v529, %v530
    %v532 = vrot.slane %v531, 1
    %v533 = vmax.f32 %v531, %v532
    %v534 = vmax.f32 %v521, %v522
    %v535 = vrot.slane %v534, 4
    %v536 = vmax.f32 %v534, %v535
    %v537 = vrot.slane %v536, 2
    %v538 = vmax.f32 %v536, %v537
    %v539 = vrot.slane %v538, 1
    %v540 = vmax.f32 %v538, %v539
    %v541 = vmax.f32 %v523, %v524
    %v542 = vrot.slane %v541, 4
    %v543 = vmax.f32 %v541, %v542
    %v544 = vrot.slane %v543, 2
    %v545 = vmax.f32 %v543, %v544
    %v546 = vrot.slane %v545, 1
    %v547 = vmax.f32 %v545, %v546
    %v548 = vmax.f32 %v525, %v526
    %v549 = vrot.slane %v548, 4
    %v550 = vmax.f32 %v548, %v549
    %v551 = vrot.slane %v550, 2
    %v552 = vmax.f32 %v550, %v551
    %v553 = vrot.slane %v552, 1
    %v554 = vmax.f32 %v552, %v553
    %v555 = vrot.slane %v259, 1
    %v556 = vrot.slane %v263, 1
    %v557 = vrot.slane %v269, 1
    %v558 = vrot.slane %v273, 1
    %v559 = vrot.slane %v279, 1
    %v560 = vrot.slane %v283, 1
    %v561 = vrot.slane %v289, 1
    %v562 = vrot.slane %v293, 1
    %v563 = vsel %vm474, %v561, %v562
    %v564 = vsel %vm474, %v560, %v561
    %v565 = vsel %vm474, %v559, %v560
    %v566 = vsel %vm474, %v558, %v559
    %v567 = vsel %vm474, %v557, %v558
    %v568 = vsel %vm474, %v556, %v557
    %v569 = vsel %vm474, %v555, %v556
    %v570 = vsel %vm474, %v562, %v555
    %v571 = vadd.f32 %v257, %v569
    %v572 = vadd.f32 %v261, %v568
    %v573 = vadd.f32 %v267, %v567
    %v574 = vadd.f32 %v271, %v566
    %v575 = vadd.f32 %v277, %v565
    %v576 = vadd.f32 %v281, %v564
    %v577 = vadd.f32 %v287, %v563
    %v578 = vadd.f32 %v291, %v570
    %v579 = vrot.slane %v330, 2
    %v580 = vrot.slane %v333, 2
    %v581 = vrot.slane %v338, 2
    %v582 = vrot.slane %v341, 2
    %v583 = vrot.slane %v346, 2
    %v584 = vrot.slane %v349, 2
    %v585 = vrot.slane %v354, 2
    %v586 = vrot.slane %v357, 2
    %vm587 = vcmp.lt.s32.totalorder %v362, 6
    %v588 = vsel %vm587, %v585, %v586
    %v589 = vsel %vm587, %v584, %v585
    %v590 = vsel %vm587, %v583, %v584
    %v591 = vsel %vm587, %v582, %v583
    %v592 = vsel %vm587, %v581, %v582
    %v593 = vsel %vm587, %v580, %v581
    %v594 = vsel %vm587, %v579, %v580
    %v595 = vsel %vm587, %v586, %v579
    %v596 = vadd.f32 %v571, %v594
    %v597 = vadd.f32 %v572, %v593
    %v598 = vadd.f32 %v573, %v592
    %v599 = vadd.f32 %v574, %v591
    %v600 = vadd.f32 %v575, %v590
    %v601 = vadd.f32 %v576, %v589
    %v602 = vadd.f32 %v577, %v588
    %v603 = vadd.f32 %v578, %v595
    %v604 = vlaneseq
    %v605 = vshrl.u32 %v604, 7
    %v606 = vsub.s32 1, %v605
    %v607 = vrot.slane %v360, %v606
    %v608 = vadd.f32 %v596, %v607
    %v609 = vadd.f32 %v597, %v607
    %v610 = vadd.f32 %v598, %v607
    %v611 = vadd.f32 %v599, %v607
    %v612 = vadd.f32 %v600, %v607
    %v613 = vadd.f32 %v601, %v607
    %v614 = vadd.f32 %v602, %v607
    %v615 = vadd.f32 %v603, %v607
    %v616 = vmax.f32 %v608, 0.0
    %v617 = vmax.f32 %v609, 0.0
    %v618 = vmax.f32 %v610, 0.0
    %v619 = vmax.f32 %v611, 0.0
    %v620 = vmax.f32 %v612, 0.0
    %v621 = vmax.f32 %v613, 0.0
    %v622 = vmax.f32 %v614, 0.0
    %v623 = vmax.f32 %v615, 0.0
    %vm624 = vcmp.lt.s32.totalorder %v458, 14
    %vm625 = vcmp.lt.s32.totalorder %v459, 14
    %vm626 = vcmp.lt.s32.totalorder %v460, 14
    %vm627 = vcmp.lt.s32.totalorder %v461, 14
    %vm628 = vcmp.lt.s32.totalorder %v462, 14
    %vm629 = vcmp.lt.s32.totalorder %v463, 14
    %vm630 = vcmp.lt.s32.totalorder %v464, 14
    %vm631 = vcmp.lt.s32.totalorder %v465, 14
    %v632 = vsel %vm624, %v616, 0.0
    %v633 = vsel %vm625, %v617, 0.0
    %v634 = vsel %vm626, %v618, 0.0
    %v635 = vsel %vm627, %v619, 0.0
    %v636 = vsel %vm628, %v620, 0.0
    %v637 = vsel %vm629, %v621, 0.0
    %v638 = vsel %vm630, %v622, 0.0
    %v639 = vsel %vm631, %v623, 0.0
    %v640 = vmax.f32 %v632, %v633
    %v641 = vrot.slane %v640, 4
    %v642 = vmax.f32 %v640, %v641
    %v643 = vrot.slane %v642, 2
    %v644 = vmax.f32 %v642, %v643
    %v645 = vrot.slane %v644, 1
    %v646 = vmax.f32 %v644, %v645
    %v647 = vmax.f32 %v634, %v635
    %v648 = vrot.slane %v647, 4
    %v649 = vmax.f32 %v647, %v648
    %v650 = vrot.slane %v649, 2
    %v651 = vmax.f32 %v649, %v650
    %v652 = vrot.slane %v651, 1
    %v653 = vmax.f32 %v651, %v652
    %v654 = vmax.f32 %v636, %v637
    %v655 = vrot.slane %v654, 4
    %v656 = vmax.f32 %v654, %v655
    %v657 = vrot.slane %v656, 2
    %v658 = vmax.f32 %v656, %v657
    %v659 = vrot.slane %v658, 1
    %v660 = vmax.f32 %v658, %v659
    %v661 = vmax.f32 %v638, %v639
    %v662 = vrot.slane %v661, 4
    %v663 = vmax.f32 %v661, %v662
    %v664 = vrot.slane %v663, 2
    %v665 = vmax.f32 %v663, %v664
    %v666 = vrot.slane %v665, 1
    %v667 = vmax.f32 %v665, %v666
    %vm672 = vcmask 1041409
    %v673 = vsel %vm672, %v540, %v533
    %vm674 = vcmask 1042434
    %v675 = vsel %vm674, %v547, %v673
    %vm676 = vcmask 1043459
    %v677 = vsel %vm676, %v554, %v675
    %v683 = vsel %vm672, %v653, %v646
    %v684 = vsel %vm674, %v660, %v683
    %v685 = vsel %vm676, %v667, %v684
    %686 = vrot.lane.b32.xlu0 %v685, 4
    %v687 = vpop.permute.xlu0 %686
    %vm689 = vcmask 31744
    %v690 = vsel %vm689, %v677, %v687
    %vm691 = vcmask 64512
    %v692 = vsel %vm691, %v690, 0.0
    %693 = vst [vmem:[#allocation7] sm:$0xf] %v692
    // Predicated region
    $region22: #{tpu_custom_call.1} parent=1 // pred_check
      _
    $region23: #{tpu_custom_call.1} parent=1 // pred_check_branch
      %695 = sbr.rel (0) target = $region25
    $region24: #{tpu_custom_call.1} parent=1 // pred_region
      %s697 = ssub.s32 64, 64
      %698 = vsyncadd [#allocation4], %s697
      %s700 = sshll.u32 [#allocation7], 4
      %s701 = int_to_ptr.vmem [resolvable:$true] %s700
      %703 = dma.vmem_to_hbm [thread:$0]  %s701, 64, %s3, [#allocation4]
    $region25: #{tpu_custom_call.1} parent=1 // pred_fallthru
      _
    // Predicated region
    $region26: #{tpu_custom_call.1} parent=1 // pred_check
      _
    $region27: #{tpu_custom_call.1} parent=1 // pred_check_branch
      %705 = sbr.rel (0) target = $region29
    $region28: #{tpu_custom_call.1} parent=1 // pred_region
      %706 = dma.done [#allocation4], 64
    $region29: #{tpu_custom_call.1} parent=1 // pred_fallthru
      _
    %707 = vsyncpa [#allocation3], 1
    %708 = vsyncpa [#allocation6], 1
    %709 = vsyncpa [#allocation4], 1

</llo_original>
